<compile_context>
chip_gen: v5e
topology: v5e:2x2
jax: 0.10.0
libtpu: 0.0.40
codegen_flags: <defaults>
</compile_context>

<pallas_src>
import jax
import jax.numpy as jnp
from jax import lax
from jax.experimental import pallas as pl
from jax.experimental.pallas import tpu as pltpu

_OUT_FEATURES = 4
_PAD_FEATURES = 8          # one sublane tile
_LANE = 128


def _rotation_head_kernel(x_ref, w_ref, b_ref, o_ref):
    # x_ref: (tile_n, F)   w_ref: (8, F)   b_ref: (8, 1)   o_ref: (8, tile_n)
    acc = lax.dot_general(
        w_ref[...], x_ref[...],
        dimension_numbers=(((1,), (1,)), ((), ())),   # contract on F (q @ k^T)
        preferred_element_type=jnp.float32,
    )
    o_ref[...] = (acc + b_ref[...]).astype(o_ref.dtype)


def _vmem_capacity_bytes():
    """Per-core VMEM capacity; conservative fallback if the query is unavailable."""
    try:
        info = pltpu.get_tpu_info()
        cap = getattr(info, "vmem_capacity_bytes", None)
        if cap:
            return int(cap)
    except Exception:
        pass
    return 64 * 1024 * 1024   # v7x per-TC VMEM (smallest current generation)


def _pick_tile_n(n, f, itemsize, vmem_cap):
    """Largest row tile whose double-buffered footprint fits comfortably in VMEM,
    shrunk so the grid still has a few steps for pipelining / megacore sharding."""
    budget = int(vmem_cap * 0.6)                          # headroom for compiler scratch
    resident = 2 * _PAD_FEATURES * f * itemsize           # (double-buffered) slim weight
    per_row = 2 * f * itemsize + 2 * _PAD_FEATURES * 4    # x + output double buffers
    cap = max(_LANE, (budget - resident) // max(per_row, 1))
    cap = max(_LANE, (cap // _LANE) * _LANE)
    cap = min(cap, 4096)                                  # diminishing returns past a few MiB
    # Aim for >= 4 grid steps so DMA/compute overlap and both v7x TCs stay busy.
    want = (n + 3) // 4
    want = max(_LANE, ((want + _LANE - 1) // _LANE) * _LANE)
    return min(cap, want)


def rotation_head(x, weight, bias, *, tile_n=None):
    """y = x @ weight.T + bias   (x: (N, F), weight: (4, F), bias: (4,)) -> (N, 4)."""
    n, f = x.shape
    itemsize = jnp.dtype(x.dtype).itemsize
    vmem_cap = _vmem_capacity_bytes()

    if tile_n is None:
        tile_n = _pick_tile_n(n, f, itemsize, vmem_cap)
    if n <= tile_n:
        tile_n = n                                         # single full-array block
    else:
        tile_n = max(_LANE, (int(tile_n) // _LANE) * _LANE)  # lane-dense output blocks

    grid = (pl.cdiv(n, tile_n),)

    # Slim padded weight / bias: 4 -> 8 rows (one sublane tile), zeros elsewhere.
    w8 = jnp.zeros((_PAD_FEATURES, f), dtype=x.dtype).at[:_OUT_FEATURES].set(
        weight.astype(x.dtype))
    b8 = jnp.zeros((_PAD_FEATURES, 1), dtype=jnp.float32).at[:_OUT_FEATURES, 0].set(
        bias.astype(jnp.float32))

    cost = pl.CostEstimate(
        flops=2 * n * f * _OUT_FEATURES,
        transcendentals=0,
        bytes_accessed=(n * f * itemsize                 # stream x
                        + n * _OUT_FEATURES * itemsize   # write y
                        + _OUT_FEATURES * f * itemsize), # read weight once
    )

    y8 = pl.pallas_call(
        _rotation_head_kernel,
        out_shape=jax.ShapeDtypeStruct((_PAD_FEATURES, n), x.dtype),
        grid_spec=pltpu.PrefetchScalarGridSpec(
            num_scalar_prefetch=0,
            grid=grid,
            in_specs=[
                # x: streamed row tiles, double-buffered by the pipeline.
                pl.BlockSpec((tile_n, f), lambda i: (i, 0)),
                # weight / bias: constant index_map -> resident in VMEM across
                # the whole grid.  (pl.Buffered(1) would drop their unused second
                # buffer; left at the default since the footprint is only 8*F.)
                pl.BlockSpec((_PAD_FEATURES, f), lambda i: (0, 0)),
                pl.BlockSpec((_PAD_FEATURES, 1), lambda i: (0, 0)),
            ],
            out_specs=pl.BlockSpec((_PAD_FEATURES, tile_n), lambda i: (0, i)),
        ),
        compiler_params=pltpu.CompilerParams(
            dimension_semantics=("parallel",),            # shard row tiles on v7x's 2 TCs
            vmem_limit_bytes=min(int(vmem_cap * 0.75), 112 * 1024 * 1024),
        ),
        cost_estimate=cost,
    )(x, w8, b8)

    # (4, N) -> (N, 4): tiny post-kernel slice+transpose (4*N elements).
    return y8[:_OUT_FEATURES, :].T


def init_rotation_head_params(key, in_features):
    """Deterministic init matching nn.init.xavier_normal_ / constant_(0)."""
    fan_in, fan_out = in_features, _OUT_FEATURES
    std = (2.0 / (fan_in + fan_out)) ** 0.5
    weight = std * jax.random.normal(key, (_OUT_FEATURES, in_features),
                                     dtype=jnp.float32)
    bias = jnp.zeros((_OUT_FEATURES,), dtype=jnp.float32)
    return weight, bias


if __name__ == "__main__":
    key = jax.random.PRNGKey(0)
    k_x, k_w, k_x2 = jax.random.split(key, 3)

    # Small shapes consistent with the module (batch of feature vectors).
    batch, in_features = 8, 32
    x = jax.random.normal(k_x, (batch, in_features), dtype=jnp.float32)
    weight, bias = init_rotation_head_params(k_w, in_features)

    y = rotation_head(x, weight, bias)
    jax.block_until_ready(y)
    y_ref = x @ weight.T + bias
    assert y.shape == (batch, _OUT_FEATURES)
    assert jnp.allclose(y, y_ref, atol=1e-5, rtol=1e-5)

    # Tiled path: N > tile_n and N not a multiple of the tile — exercises the
    # masked partial last block (no wrapper jnp.pad anymore).
    big_n = 1000
    x_big = jax.random.normal(k_x2, (big_n, in_features), dtype=jnp.float32)
    y_big = rotation_head(x_big, weight, bias, tile_n=256)
    jax.block_until_ready(y_big)
    y_big_ref = x_big @ weight.T + bias
    assert y_big.shape == (big_n, _OUT_FEATURES)
    assert jnp.allclose(y_big, y_big_ref, atol=1e-5, rtol=1e-5)

    print("KERNEL_OK")
</pallas_src>

<mosaic_0001>
module attributes {stable_mosaic.version = 11 : i64} {
  func.func @_rotation_head_kernel(%arg0: i32, %arg1: memref<8x32xf32, #tpu.memory_space<vmem>>, %arg2: memref<8x32xf32, #tpu.memory_space<vmem>>, %arg3: memref<8x1xf32, #tpu.memory_space<vmem>>, %arg4: memref<8x8xf32, #tpu.memory_space<vmem>>) attributes {dimension_semantics = [#tpu.dimension_semantics<parallel>], iteration_bounds = array<i64: 1>, scalar_prefetch = 0 : i64, scratch_operands = 0 : i64, tpu.core_type = #tpu.core_type<tc>, window_params = [{transform_indices = @transform_0, window_bounds = array<i64: 8, 32>}, {pipeline_mode = #tpu.pipeline_mode<synchronous>, transform_indices = @transform_1, window_bounds = array<i64: 8, 32>}, {pipeline_mode = #tpu.pipeline_mode<synchronous>, transform_indices = @transform_2, window_bounds = array<i64: 8, 1>}, {transform_indices = @transform_3, window_bounds = array<i64: 8, 8>}]} {
    %c0 = arith.constant 0 : index
    %c0_0 = arith.constant 0 : index
    %0 = vector.load %arg2[%c0, %c0_0] : memref<8x32xf32, #tpu.memory_space<vmem>>, vector<8x32xf32>
    %c0_1 = arith.constant 0 : index
    %c0_2 = arith.constant 0 : index
    %1 = vector.load %arg1[%c0_1, %c0_2] : memref<8x32xf32, #tpu.memory_space<vmem>>, vector<8x32xf32>
    %cst = arith.constant dense<0.000000e+00> : vector<8x8xf32>
    %2 = tpu.matmul %0, %1, %cst {dimension_numbers = #tpu.dot_dimension_numbers<[1], [1], [0], [0], [0, 0, 1, 0], [], []>} : vector<8x32xf32>, vector<8x32xf32>, vector<8x8xf32> -> vector<8x8xf32>
    %c0_3 = arith.constant 0 : index
    %c0_4 = arith.constant 0 : index
    %3 = vector.load %arg3[%c0_3, %c0_4] : memref<8x1xf32, #tpu.memory_space<vmem>>, vector<8x1xf32>
    %4 = vector.broadcast %3 : vector<8x1xf32> to vector<8x8xf32>
    %5 = arith.addf %2, %4 : vector<8x8xf32>
    %c0_5 = arith.constant 0 : index
    %c0_6 = arith.constant 0 : index
    %6 = vector.load %arg4[%c0_5, %c0_6] : memref<8x8xf32, #tpu.memory_space<vmem>>, vector<8x8xf32>
    tpu.vector_store %arg4[%c0_5, %c0_6], %5 {strides = array<i32>} : memref<8x8xf32, #tpu.memory_space<vmem>>, vector<8x8xf32>,
    return
  }
  func.func @transform_0(%arg0: i32) -> (i32, i32) {
    %c0_i32 = arith.constant 0 : i32
    %c0_i32_0 = arith.constant 0 : i32
    return %arg0, %c0_i32 : i32, i32
  }
  func.func @transform_1(%arg0: i32) -> (i32, i32) {
    %c0_i32 = arith.constant 0 : i32
    %c0_i32_0 = arith.constant 0 : i32
    %c0_i32_1 = arith.constant 0 : i32
    return %c0_i32, %c0_i32_0 : i32, i32
  }
  func.func @transform_2(%arg0: i32) -> (i32, i32) {
    %c0_i32 = arith.constant 0 : i32
    %c0_i32_0 = arith.constant 0 : i32
    %c0_i32_1 = arith.constant 0 : i32
    return %c0_i32, %c0_i32_0 : i32, i32
  }
  func.func @transform_3(%arg0: i32) -> (i32, i32) {
    %c0_i32 = arith.constant 0 : i32
    %c0_i32_0 = arith.constant 0 : i32
    return %c0_i32, %arg0 : i32, i32
  }
}

</mosaic_0001>

<llo_original>
// kernel: tpu_custom_call.1
$region0: #{tpu_custom_call.1}
  #allocation0 [shape = 'u32[]', space=smem, size = 0x4, offset = 0x4, fixed_abs, tag = 'smem constant byte address 0x4 - core index']
  #allocation1 [shape = 'u32[72,128]{1,0:T(1,128)}', space=vmem, size = 0x9000, scoped, tag = 'internal scratch']
  %s0 = inlined_call_operand.vmem [shape: f32[8,32], index: 0, kind: input, shape index: {}]
  %s1 = inlined_call_operand.hbm [shape: f32[8,32], index: 1, kind: input, shape index: {}]
  %s2 = inlined_call_operand.vmem [shape: f32[8,1], index: 2, kind: input, shape index: {}]
  %s3 = inlined_call_operand.hbm [shape: f32[8,8], index: 3, kind: output, shape index: {}]
  %s4 = sld [smem:[#allocation0]]
  $region26: #{tpu_custom_call.1} parent=0
    _
  %s6 = ssub.s32 1, %s4
  %s7 = scalar_select 0, %s6, %s4
  $region1: #{tpu_custom_call.1} parent=0
    #allocation2 [shape = 'u8[4096]{0}', space=vmem, size = 0x1000, scoped, tag = 'input window, operand 1, single buffered']
    #allocation3 [shape = 's32[1]{0}', space=sflag, size = 0x4, scoped, tag = 'scoped memory for tpu_custom_call.1']
    #allocation4 [shape = 's32[1]{0}', space=sflag, size = 0x4, scoped, tag = 'scoped memory for tpu_custom_call.1']
    #allocation5 [shape = 'u8[4096]{0}', space=vmem, size = 0x1000, scoped, tag = 'output window, operand 0, single buffered']
    %8 = vsyncpa [#allocation3], 0
    %9 = vsyncpa [#allocation4], 0
    // Predicated region
    $region2: #{tpu_custom_call.1} parent=1 // pred_check
      _
    $region3: #{tpu_custom_call.1} parent=1 // pred_check_branch
      %11 = sbr.rel (0) target = $region5
    $region4: #{tpu_custom_call.1} parent=1 // pred_region
      _
    $region5: #{tpu_custom_call.1} parent=1 // pred_fallthru
      _
    // Predicated region
    $region6: #{tpu_custom_call.1} parent=1 // pred_check
      _
    $region7: #{tpu_custom_call.1} parent=1 // pred_check_branch
      %13 = sbr.rel (0) target = $region9
    $region8: #{tpu_custom_call.1} parent=1 // pred_region
      %15 = vsyncadd [#allocation3], 0
      %s17 = sshll.u32 %s1, 4
      %s18 = int_to_ptr.hbm [resolvable:$true] %s17
      %s19 = sshll.u32 [#allocation2], 4
      %s20 = int_to_ptr.vmem [resolvable:$true] %s19
      %22 = dma.hbm_to_vmem [thread:$0]  %s18, 128, %s20, [#allocation3]
    $region9: #{tpu_custom_call.1} parent=1 // pred_fallthru
      _
    // Predicated region
    $region10: #{tpu_custom_call.1} parent=1 // pred_check
      _
    $region11: #{tpu_custom_call.1} parent=1 // pred_check_branch
      %24 = sbr.rel (0) target = $region13
    $region12: #{tpu_custom_call.1} parent=1 // pred_region
      _
    $region13: #{tpu_custom_call.1} parent=1 // pred_fallthru
      _
    // Predicated region
    $region14: #{tpu_custom_call.1} parent=1 // pred_check
      _
    $region15: #{tpu_custom_call.1} parent=1 // pred_check_branch
      %26 = sbr.rel (0) target = $region17
    $region16: #{tpu_custom_call.1} parent=1 // pred_region
      %28 = dma.done [#allocation3], 128
    $region17: #{tpu_custom_call.1} parent=1 // pred_fallthru
      _
    %v29 = vld [vmem:[#allocation2] sm:$0xff]
    %v30 = vld [vmem:[%s0] sm:$0xff]
    %v31 = vld [vmem:[%s2] sm:$0xff]
    %33 = vset.pattern.permute.xlu0 0
    %34 = vperm.xlu0 %33, %v31
    %v35 = vpop.permute.xlu0 %34
    %vm37 = vcmask 261120
    %v39 = vsel %vm37, %v29, 0
    %v42 = vsel %vm37, %v30, 0
    %44 = vmatpush.xpose.msra.mxu0 0.0
    %45 = vmatpush.xpose.msra.mxu0 0.0
    %46 = vmatpush.xpose.msra.mxu0 0.0
    %47 = vmatpush.xpose.msra.mxu0 0.0
    %48 = vmatpush.xpose.msra.mxu0 0.0
    %49 = vmatpush.xpose.msra.mxu0 0.0
    %50 = vmatpush.xpose.msra.mxu0 0.0
    %51 = vmatpush.xpose.msra.mxu0 0.0
    %52 = vmatpush.xpose.msra.mxu0 0.0
    %53 = vmatpush.xpose.msra.mxu0 0.0
    %54 = vmatpush.xpose.msra.mxu0 0.0
    %55 = vmatpush.xpose.msra.mxu0 0.0
    %56 = vmatpush.xpose.msra.mxu0 0.0
    %57 = vmatpush.xpose.msra.mxu0 0.0
    %58 = vmatpush.xpose.msra.mxu0 0.0
    %59 = vmatpush.xpose.msra.mxu0 %v42
    %60 = vmatmul.f32.gmra.mxu0 %v39
    %v61 = vpop.f32.mrf.mxu0
    %v62 = vadd.f32 %v35, %v61
    %63 = vdwg.mxu0
    %vm64 = vcmask 64512
    %65 = vst.msk [vmem:[#allocation5] sm:$0xff] %vm64, %v62
    // Predicated region
    $region18: #{tpu_custom_call.1} parent=1 // pred_check
      _
    $region19: #{tpu_custom_call.1} parent=1 // pred_check_branch
      %67 = sbr.rel (0) target = $region21
    $region20: #{tpu_custom_call.1} parent=1 // pred_region
      %69 = vsyncadd [#allocation4], 0
      %s71 = sshll.u32 [#allocation5], 4
      %s72 = int_to_ptr.vmem [resolvable:$true] %s71
      %s73 = sshll.u32 %s3, 4
      %s74 = int_to_ptr.hbm [resolvable:$true] %s73
      %76 = dma.vmem_to_hbm [thread:$0]  %s72, 128, %s74, [#allocation4]
    $region21: #{tpu_custom_call.1} parent=1 // pred_fallthru
      _
    // Predicated region
    $region22: #{tpu_custom_call.1} parent=1 // pred_check
      _
    $region23: #{tpu_custom_call.1} parent=1 // pred_check_branch
      %78 = sbr.rel (0) target = $region25
    $region24: #{tpu_custom_call.1} parent=1 // pred_region
      %80 = dma.done [#allocation4], 128
    $region25: #{tpu_custom_call.1} parent=1 // pred_fallthru
      _
    %81 = vsyncpa [#allocation3], 1
    %82 = vsyncpa [#allocation4], 1

</llo_original>
